<compile_context>
chip_gen: v7x
topology: tpu7x:2x2x1
jax: 0.10.0
libtpu: 0.0.40
codegen_flags: <defaults>
</compile_context>

<pallas_src>
import re

import jax
import jax.numpy as jnp
from jax.experimental import pallas as pl
from jax.experimental.pallas import tpu as pltpu


ALPHA = 0.25  # hyper-parameter from SMU.__init__(alpha=0.25)


def _tpu_generation():
    """Best-effort TPU generation number (5, 6, 7, ...); defaults to 6."""
    try:
        kind = jax.devices()[0].device_kind  # e.g. "TPU v5 lite", "TPU v6e", "TPU7x"
        m = re.search(r"(\d+)", kind)
        if m:
            return int(m.group(1))
    except Exception:
        pass
    return 6


def _make_smu_kernel(alpha, compute_dtype):
    c1 = 0.5 * (1.0 + alpha)
    c2 = 0.5 * (1.0 - alpha)

    def _smu_kernel(c3_ref, x_ref, o_ref):
        """Elementwise SMU on one (tile_rows, lanes) block.

        c3_ref: SMEM scalar = mu * (1 - alpha), folded in the wrapper.
        x_ref / o_ref: VMEM tiles.
        """
        x = x_ref[...]
        if x.dtype != compute_dtype:          # trace-time branch
            x = x.astype(compute_dtype)
        c3 = c3_ref[0].astype(compute_dtype)  # scalar cast, cheap
        y = x * (c1 + c2 * jax.lax.erf(c3 * x))
        o_ref[...] = y.astype(o_ref.dtype)

    return _smu_kernel


def _smu_jnp(x, mu, alpha):
    """Plain-jnp SMU, used only for tiny ragged tails."""
    return ((1 + alpha) * x
            + (1 - alpha) * x * jax.lax.erf(mu * (1 - alpha) * x)) / 2


def _smu_2d(x2d, mu, *, alpha, gen, donate):
    """Run the Pallas kernel over a lane-dense 2-D slab.

    Requires rows % 8 == 0 and lanes % 128 == 0 (callers guarantee this).
    """
    rows, lanes = x2d.shape
    itemsize = jnp.dtype(x2d.dtype).itemsize

    # Generation-aware block / scoped-VMEM budget (>= 16 MiB physical headroom):
    #   v7x : 64 MiB VMEM, 3.2 TB/s HBM  -> 8 MiB blocks, 40 MiB limit
    #   v6e : 128 MiB VMEM, 1.4 TB/s HBM -> 8 MiB blocks, 64 MiB limit
    #   v5e : 128 MiB VMEM, 0.8 TB/s HBM -> 4 MiB blocks, 32 MiB limit
    #         (explicit limit matters: v5e scoped default is only 16 MiB)
    if gen >= 7:
        max_block_bytes, vmem_limit = 8 << 20, 40 << 20
    elif gen == 6:
        max_block_bytes, vmem_limit = 8 << 20, 64 << 20
    else:
        max_block_bytes, vmem_limit = 4 << 20, 32 << 20

    # Sublane rounding for packed dtypes: f32 -> 8, bf16/f16 -> 16, int8/fp8 -> 32.
    sub = 8 * max(1, 4 // itemsize)

    tile_rows = min(rows, max_block_bytes // (lanes * itemsize))
    tile_rows = (tile_rows // sub) * sub
    if tile_rows == 0:
        # Tiny array (rows < sub): a full-extent block is always legal.
        tile_rows = rows
    elif tile_rows >= rows and rows >= 2 * sub:
        # Guarantee >= 2 grid steps so dimension_semantics=("parallel",) can
        # shard across both TensorCores on v7x. On 1-TC chips this only costs
        # ~0.35 us of extra per-step overhead, which is negligible.
        tile_rows = pl.cdiv(pl.cdiv(rows, 2), sub) * sub

    grid = (pl.cdiv(rows, tile_rows),)  # ragged last block handled by Pallas

    # bf16 VPU/EUP exist on v6e/v7x: keep bf16 streams in bf16 so the erf
    # polynomial doesn't turn the kernel VALU-bound against 3.2 TB/s HBM.
    # v5e has no bf16 VPU -> upcast to f32 (hidden under DMA there anyway).
    if x2d.dtype == jnp.bfloat16 and gen >= 6:
        compute_dtype = jnp.bfloat16
    else:
        compute_dtype = jnp.float32

    # Fold mu*(1-alpha) into the single SMEM scalar the kernel reads.
    c3 = jnp.asarray([jnp.float32(mu) * (1.0 - alpha)], dtype=jnp.float32)

    total = rows * lanes
    cost = pl.CostEstimate(
        flops=4 * total,               # 3 mul + 1 add per element (excl. erf)
        transcendentals=total,         # one erf per element
        bytes_accessed=2 * total * itemsize,
    )

    return pl.pallas_call(
        _make_smu_kernel(alpha, compute_dtype),
        out_shape=jax.ShapeDtypeStruct((rows, lanes), x2d.dtype),
        grid=grid,
        in_specs=[
            pl.BlockSpec(memory_space=pltpu.MemorySpace.SMEM),   # c3 scalar
            pl.BlockSpec((tile_rows, lanes), lambda i: (i, 0)),
        ],
        out_specs=pl.BlockSpec((tile_rows, lanes), lambda i: (i, 0)),
        compiler_params=pltpu.CompilerParams(
            dimension_semantics=("parallel",),
            vmem_limit_bytes=vmem_limit),
        cost_estimate=cost,
        input_output_aliases=({1: 0} if donate else {}),
    )(c3, x2d)


def smu(x, mu, *, alpha=ALPHA, donate=False):
    """Apply SMU activation. x: any shape (e.g. [N, C, H, W]); mu: scalar."""
    orig_shape = x.shape
    total = x.size
    gen = _tpu_generation()

    # Pad-free, lane-dense 2-D view: widest lanes (multiple of 128) dividing
    # the element count, preferring one that leaves >= 16 rows so the grid can
    # have >= 2 steps (both TCs used on v7x).
    divisible = [c for c in (4096, 2048, 1024, 512, 256, 128)
                 if total % (8 * c) == 0]
    lanes = None
    for c in divisible:
        if total // c >= 16:
            lanes = c
            break
    if lanes is None and divisible:
        lanes = divisible[0]

    if lanes is not None:
        x2d = jnp.reshape(x, (total // lanes, lanes))
        out2d = _smu_2d(x2d, mu, alpha=alpha, gen=gen, donate=donate)
        return jnp.reshape(out2d, orig_shape)

    # Ragged element count: run the kernel on the (8*128)-aligned prefix and
    # finish the (<1024-element) tail with plain jnp. This avoids the old
    # full-tensor pad + slice round trip (two extra HBM passes).
    unit = 8 * 128
    prefix = (total // unit) * unit
    flat = jnp.reshape(x, (total,))
    if prefix == 0:
        return jnp.reshape(_smu_jnp(flat, mu, alpha), orig_shape)
    head2d = jnp.reshape(flat[:prefix], (prefix // 128, 128))
    head = jnp.reshape(
        _smu_2d(head2d, mu, alpha=alpha, gen=gen, donate=False), (prefix,))
    tail = _smu_jnp(flat[prefix:], mu, alpha)
    return jnp.reshape(jnp.concatenate([head, tail]), orig_shape)


def smu_reference(x, mu, alpha=ALPHA):
    """Pure-JAX reference matching the PyTorch forward exactly."""
    return ((1 + alpha) * x
            + (1 - alpha) * x * jax.lax.erf(mu * (1 - alpha) * x)) / 2


if __name__ == "__main__":
    key = jax.random.PRNGKey(0)
    x = jax.random.normal(key, (2, 4, 16, 16), dtype=jnp.float32)

    # mu = 1e6 matches torch.nn.Parameter(torch.tensor(1000000.0)) (erf
    # saturates); also test an O(1) mu so the erf curve itself is exercised.
    for mu in (jnp.float32(1000000.0), jnp.float32(0.5)):
        out = jax.block_until_ready(smu(x, mu))
        ref = smu_reference(x, mu)
        assert out.shape == x.shape and out.dtype == x.dtype
        assert jnp.allclose(out, ref, atol=1e-5, rtol=1e-5), "mismatch vs ref"

    # Ragged element count -> aligned-prefix kernel + jnp tail path.
    xr = jax.random.normal(jax.random.PRNGKey(1), (3, 5, 9, 13),
                           dtype=jnp.float32)
    mur = jnp.float32(0.5)
    outr = jax.block_until_ready(smu(xr, mur))
    assert outr.shape == xr.shape and outr.dtype == xr.dtype
    assert jnp.allclose(outr, smu_reference(xr, mur), atol=1e-5, rtol=1e-5), \
        "ragged-path mismatch vs ref"

    print("KERNEL_OK")
</pallas_src>

<mosaic_0001>
module attributes {stable_mosaic.version = 11 : i64} {
  func.func @_smu_kernel(%arg0: i32, %arg1: memref<1xf32, #tpu.memory_space<smem>>, %arg2: memref<8x128xf32, #tpu.memory_space<vmem>>, %arg3: memref<8x128xf32, #tpu.memory_space<vmem>>) attributes {dimension_semantics = [#tpu.dimension_semantics<parallel>], iteration_bounds = array<i64: 2>, scalar_prefetch = 0 : i64, scratch_operands = 0 : i64, tpu.core_type = #tpu.core_type<tc>, window_params = [{transform_indices = @transform_0, window_bounds = array<i64: 1>}, {transform_indices = @transform_1, window_bounds = array<i64: 8, 128>}, {transform_indices = @transform_2, window_bounds = array<i64: 8, 128>}]} {
    %c0 = arith.constant 0 : index
    %c0_0 = arith.constant 0 : index
    %0 = vector.load %arg2[%c0, %c0_0] : memref<8x128xf32, #tpu.memory_space<vmem>>, vector<8x128xf32>
    %c0_1 = arith.constant 0 : index
    %1 = memref.load %arg1[%c0_1] : memref<1xf32, #tpu.memory_space<smem>>
    %2 = vector.broadcast %1 : f32 to vector<8x128xf32>
    %3 = arith.mulf %2, %0 : vector<8x128xf32>
    %4 = math.erf %3 : vector<8x128xf32>
    %cst = arith.constant 3.750000e-01 : f32
    %5 = vector.broadcast %cst : f32 to vector<8x128xf32>
    %6 = arith.mulf %5, %4 : vector<8x128xf32>
    %cst_2 = arith.constant 6.250000e-01 : f32
    %7 = vector.broadcast %cst_2 : f32 to vector<8x128xf32>
    %8 = arith.addf %7, %6 : vector<8x128xf32>
    %9 = arith.mulf %0, %8 : vector<8x128xf32>
    %c0_3 = arith.constant 0 : index
    %c0_4 = arith.constant 0 : index
    %10 = vector.load %arg3[%c0_3, %c0_4] : memref<8x128xf32, #tpu.memory_space<vmem>>, vector<8x128xf32>
    tpu.vector_store %arg3[%c0_3, %c0_4], %9 {strides = array<i32>} : memref<8x128xf32, #tpu.memory_space<vmem>>, vector<8x128xf32>,
    return
  }
  func.func @transform_0(%arg0: i32) -> i32 {
    %c0_i32 = arith.constant 0 : i32
    %c0_i32_0 = arith.constant 0 : i32
    return %c0_i32 : i32
  }
  func.func @transform_1(%arg0: i32) -> (i32, i32) {
    %c0_i32 = arith.constant 0 : i32
    %c0_i32_0 = arith.constant 0 : i32
    return %arg0, %c0_i32 : i32, i32
  }
  func.func @transform_2(%arg0: i32) -> (i32, i32) {
    %c0_i32 = arith.constant 0 : i32
    %c0_i32_0 = arith.constant 0 : i32
    return %arg0, %c0_i32 : i32, i32
  }
}

</mosaic_0001>

<llo_original>
// kernel: tpu_custom_call.1
$region0: #{tpu_custom_call.1}
  #allocation0 [shape = 'u32[]', space=smem, size = 0x4, offset = 0x4, fixed_abs, tag = 'smem constant byte address 0x4 - core index']
  #allocation1 [shape = 'u32[144,128]{1,0:T(1,128)}', space=vmem, size = 0x12000, scoped, tag = 'internal scratch']
  #allocation2 [shape = 'f32[1]{0:T(128)S(6)}', space=smem, size = 0x200, scoped, tag = 'scoped memory for tpu_custom_call.1']
  %s0 = inlined_call_operand.<no memory space> [shape: f32[1], index: 0, kind: input, shape index: {}]
  %s1 = inlined_call_operand.hbm [shape: f32[16,128], index: 1, kind: input, shape index: {}]
  %s2 = inlined_call_operand.hbm [shape: f32[16,128], index: 2, kind: output, shape index: {}]
  %s3 = sld [smem:[#allocation0]]
  $region45: #{tpu_custom_call.1} parent=0
    _
  %s5 = ssub.s32 1, %s3
  %s6 = scalar_select 0, %s5, %s3
  %7 = sst [smem:[#allocation2]] %s0
  $region1: #{tpu_custom_call.1} parent=0
    #allocation3 [shape = 'u8[8192]{0}', space=vmem, size = 0x2000, scoped, tag = 'input window, operand 1']
    #allocation4 [shape = 's32[2]{0}', space=sflag, size = 0x8, scoped, tag = 'scoped memory for tpu_custom_call.1']
    #allocation5 [shape = 's32[2]{0}', space=sflag, size = 0x8, scoped, tag = 'scoped memory for tpu_custom_call.1']
    #allocation6 [shape = 'u8[8192]{0}', space=vmem, size = 0x2000, scoped, tag = 'output window, operand 0']
    %8 = vsyncpa [#allocation4], 0
    %s9 = scalar_lea.sflag [#allocation4], 1
    %10 = vsyncpa %s9, 0
    %11 = vsyncpa [#allocation5], 0
    %s12 = scalar_lea.sflag [#allocation5], 1
    %13 = vsyncpa %s12, 0
    loop: start=0, step=1, limit=4
    $region2: #{tpu_custom_call.1} parent=1 // loop_pre_header
      _
    $region3: #{tpu_custom_call.1} parent=1 // loop_header
      %s15 = sphi 0, %s19
      %p16 = scmp.ge.s32.totalorder %s15, 4
      %s23 = sphi 0, %s23
      %s25 = sphi 0, %s23
      %s26 = sphi 0, %s25
      %s40 = sphi 0, %s26
      %s46 = sphi 0, %s48
      %s49 = sphi 0, %s46
      %s50 = sphi 0, %s49
      %s66 = sphi 0, %s50
      %s72 = sphi 0, %s74
      %s75 = sphi 0, %s72
      %s76 = sphi 0, %s75
      %s92 = sphi 0, %s76
    $region4: #{tpu_custom_call.1} parent=1 // loop_header_branch
      %18 = sbr.rel (%p16) target = $region8
    $region5: #{tpu_custom_call.1} parent=1 // loop_body
      %s20 = ssub.s32 %s15, 1
      %s21 = ssub.s32 %s15, 2
      %s22 = sadd.s32 %s15, 1
      %s24 = sadd.s32 %s23, 1
      %p27 = scmp.eq.s32.totalorder %s15, 1
      %p28 = scmp.ne.s32.totalorder %s23, %s25
      %p29 = scmp.eq.s32.totalorder %s15, 0
      %p30 = por %p28, %p29
      %p31 = scmp.ne.s32.totalorder %s23, %s25
      %p32 = scmp.eq.s32.totalorder %s20, 1
      %p33 = por %p31, %p32
      %p34 = scmp.ne.s32.totalorder %s25, %s26
      %p35 = scmp.eq.s32.totalorder %s20, 0
      %p36 = por %p34, %p35
      %p37 = scmp.ne.s32.totalorder %s25, %s26
      %p38 = scmp.eq.s32.totalorder %s21, 1
      %p39 = por %p37, %p38
      %p41 = scmp.ne.s32.totalorder %s26, %s40
      %p42 = scmp.eq.s32.totalorder %s21, 0
      %p43 = por %p41, %p42
      %s44 = ssub.s32 %s15, %s22
      %p45 = scmp.eq.s32.totalorder %s44, 0
      %s47 = sadd.s32 %s46, 1
      %s48 = scalar_select %p45, %s46, %s47
      %p51 = pneg %p45
      %p52 = scmp.eq.s32.totalorder %s15, 1
      %p53 = por %p51, %p52
      %p54 = scmp.ne.s32.totalorder %s46, %s49
      %p55 = scmp.eq.s32.totalorder %s15, 0
      %p56 = por %p54, %p55
      %p57 = scmp.ne.s32.totalorder %s46, %s49
      %p58 = scmp.eq.s32.totalorder %s20, 1
      %p59 = por %p57, %p58
      %p60 = scmp.ne.s32.totalorder %s49, %s50
      %p61 = scmp.eq.s32.totalorder %s20, 0
      %p62 = por %p60, %p61
      %p63 = scmp.ne.s32.totalorder %s49, %s50
      %p64 = scmp.eq.s32.totalorder %s21, 1
      %p65 = por %p63, %p64
      %p67 = scmp.ne.s32.totalorder %s50, %s66
      %p68 = scmp.eq.s32.totalorder %s21, 0
      %p69 = por %p67, %p68
      %s70 = ssub.s32 %s15, %s22
      %p71 = scmp.eq.s32.totalorder %s70, 0
      %s73 = sadd.s32 %s72, 1
      %s74 = scalar_select %p71, %s72, %s73
      %p77 = pneg %p71
      %p78 = scmp.eq.s32.totalorder %s15, 1
      %p79 = por %p77, %p78
      %p80 = scmp.ne.s32.totalorder %s72, %s75
      %p81 = scmp.eq.s32.totalorder %s15, 0
      %p82 = por %p80, %p81
      %p83 = scmp.ne.s32.totalorder %s72, %s75
      %p84 = scmp.eq.s32.totalorder %s20, 1
      %p85 = por %p83, %p84
      %p86 = scmp.ne.s32.totalorder %s75, %s76
      %p87 = scmp.eq.s32.totalorder %s20, 0
      %p88 = por %p86, %p87
      %p89 = scmp.ne.s32.totalorder %s75, %s76
      %p90 = scmp.eq.s32.totalorder %s21, 1
      %p91 = por %p89, %p90
      %p93 = scmp.ne.s32.totalorder %s76, %s92
      %p94 = scmp.eq.s32.totalorder %s21, 0
      %p95 = por %p93, %p94
      %p96 = scmp.le.s32.totalorder 1, %s15
      %p97 = scmp.lt.s32.totalorder %s15, 3
      %p98 = pnand %p96, %p97
      %p99 = pneg %p98
      // Predicated region
      $region9: #{tpu_custom_call.1} parent=5 // pred_check
        _
      $region10: #{tpu_custom_call.1} parent=5 // pred_check_branch
        %101 = sbr.rel (%p98) target = $region12
      $region11: #{tpu_custom_call.1} parent=5 // pred_region
        %s102 = ssub.s32 %s15, 1
        // Predicated region
        $region13: #{tpu_custom_call.1} parent=11 // pred_check
          %p103 = pneg %p36
        $region14: #{tpu_custom_call.1} parent=11 // pred_check_branch
          %105 = sbr.rel (%p103) target = $region16
        $region15: #{tpu_custom_call.1} parent=11 // pred_region
          _
        $region16: #{tpu_custom_call.1} parent=11 // pred_fallthru
          _
      $region12: #{tpu_custom_call.1} parent=5 // pred_fallthru
        _
      %p106 = scmp.lt.s32.totalorder %s15, 2
      // Predicated region
      $region17: #{tpu_custom_call.1} parent=5 // pred_check
        %p107 = pneg %p106
      $region18: #{tpu_custom_call.1} parent=5 // pred_check_branch
        %109 = sbr.rel (%p107) target = $region20
      $region19: #{tpu_custom_call.1} parent=5 // pred_region
        // Predicated region
        $region21: #{tpu_custom_call.1} parent=19 // pred_check
          %p110 = pneg %p56
        $region22: #{tpu_custom_call.1} parent=19 // pred_check_branch
          %112 = sbr.rel (%p110) target = $region24
        $region23: #{tpu_custom_call.1} parent=19 // pred_region
          %s113 = sand.u32 %s46, 1
          %s114 = scalar_lea.sflag [#allocation4], %s113
          %s115 = sand.u32 %s46, 1
          %s116 = smul.addr %s115, 8
          %s117 = scalar_lea.vmem [#allocation3], %s116
          %s119 = ssub.s32 128, 128
          %120 = vsyncadd %s114, %s119
          %s121 = smul.addr %s15, 128
          %s122 = scalar_lea.hbm %s1, %s121
          %s124 = sshll.u32 %s117, 4
          %s125 = int_to_ptr.vmem [resolvable:$true] %s124
          %127 = dma.hbm_to_vmem [thread:$0]  %s122, 128, %s125, %s114
        $region24: #{tpu_custom_call.1} parent=19 // pred_fallthru
          _
      $region20: #{tpu_custom_call.1} parent=5 // pred_fallthru
        _
      %p128 = scmp.le.s32.totalorder 1, %s15
      %p129 = scmp.lt.s32.totalorder %s15, 3
      %p130 = pnand %p128, %p129
      %p131 = pneg %p130
      // Predicated region
      $region25: #{tpu_custom_call.1} parent=5 // pred_check
        _
      $region26: #{tpu_custom_call.1} parent=5 // pred_check_branch
        %133 = sbr.rel (%p130) target = $region28
      $region27: #{tpu_custom_call.1} parent=5 // pred_region
        %s134 = ssub.s32 %s15, 1
        %s135 = sand.u32 %s49, 1
        %s136 = scalar_lea.sflag [#allocation4], %s135
        %s137 = sand.u32 %s49, 1
        %s138 = smul.addr %s137, 8
        %s139 = scalar_lea.vmem [#allocation3], %s138
        // Predicated region
        $region29: #{tpu_custom_call.1} parent=27 // pred_check
          %p140 = pneg %p62
        $region30: #{tpu_custom_call.1} parent=27 // pred_check_branch
          %142 = sbr.rel (%p140) target = $region32
        $region31: #{tpu_custom_call.1} parent=27 // pred_region
          %143 = dma.done %s136, 128
        $region32: #{tpu_custom_call.1} parent=27 // pred_fallthru
          _
        %p144 = pneg %p36
        %p145 = pneg %p33
        %s146 = sand.u32 %s49, 1
        %s147 = scalar_lea.sflag [#allocation4], %s146
        %s148 = sand.u32 %s49, 1
        %s149 = smul.addr %s148, 8
        %s150 = scalar_lea.vmem [#allocation3], %s149
        %p151 = pneg %p62
        %p152 = pneg %p59
        %p153 = pneg %p88
        %p154 = pneg %p85
        %s155 = sand.u32 %s75, 1
        %s156 = scalar_lea.sflag [#allocation5], %s155
        %s157 = sand.u32 %s75, 1
        %s158 = smul.addr %s157, 8
        %s159 = scalar_lea.vmem [#allocation6], %s158
        %v160 = vld [vmem:[%s139] sm:$0xff]
        %s161 = sld [smem:[#allocation2]]
        %v162 = vstv %s161
        %v163 = vmul.f32 %v162, %v160
        %v164 = verf.f32.pop %v163
        %v165 = vmul.f32 %v164, 0.375
        %v166 = vadd.f32 %v165, 0.625
        %v167 = vmul.f32 %v160, %v166
        %168 = vst [vmem:[%s159] sm:$0xff] %v167
        %s169 = sand.u32 %s75, 1
        %s170 = scalar_lea.sflag [#allocation5], %s169
        %s171 = sand.u32 %s75, 1
        %s172 = smul.addr %s171, 8
        %s173 = scalar_lea.vmem [#allocation6], %s172
        // Predicated region
        $region33: #{tpu_custom_call.1} parent=27 // pred_check
          %p174 = pneg %p85
        $region34: #{tpu_custom_call.1} parent=27 // pred_check_branch
          %176 = sbr.rel (%p174) target = $region36
        $region35: #{tpu_custom_call.1} parent=27 // pred_region
          %s178 = ssub.s32 128, 128
          %179 = vsyncadd %s170, %s178
          %s180 = smul.addr %s20, 128
          %s181 = scalar_lea.hbm %s2, %s180
          %s183 = sshll.u32 %s173, 4
          %s184 = int_to_ptr.vmem [resolvable:$true] %s183
          %186 = dma.vmem_to_hbm [thread:$0]  %s184, 128, %s181, %s170
        $region36: #{tpu_custom_call.1} parent=27 // pred_fallthru
          _
      $region28: #{tpu_custom_call.1} parent=5 // pred_fallthru
        _
      %p187 = scmp.le.s32.totalorder 2, %s15
      // Predicated region
      $region37: #{tpu_custom_call.1} parent=5 // pred_check
        %p188 = pneg %p187
      $region38: #{tpu_custom_call.1} parent=5 // pred_check_branch
        %190 = sbr.rel (%p188) target = $region40
      $region39: #{tpu_custom_call.1} parent=5 // pred_region
        %s191 = ssub.s32 %s15, 2
        // Predicated region
        $region41: #{tpu_custom_call.1} parent=39 // pred_check
          %p192 = pneg %p91
        $region42: #{tpu_custom_call.1} parent=39 // pred_check_branch
          %194 = sbr.rel (%p192) target = $region44
        $region43: #{tpu_custom_call.1} parent=39 // pred_region
          %s195 = sand.u32 %s76, 1
          %s196 = scalar_lea.sflag [#allocation5], %s195
          %s197 = sand.u32 %s76, 1
          %s198 = smul.addr %s197, 8
          %s199 = scalar_lea.vmem [#allocation6], %s198
          %200 = dma.done %s196, 128
        $region44: #{tpu_custom_call.1} parent=39 // pred_fallthru
          _
      $region40: #{tpu_custom_call.1} parent=5 // pred_fallthru
        _
    $region6: #{tpu_custom_call.1} parent=1 // loop_footer
      %s19 = sadd.s32 1, %s15
    $region7: #{tpu_custom_call.1} parent=1 // loop_footer_branch
      %14 = sbr.rel target = $region3
    $region8: #{tpu_custom_call.1} parent=1 // loop_exit
      _
    %201 = vsyncpa [#allocation4], 1
    %s202 = scalar_lea.sflag [#allocation4], 1
    %203 = vsyncpa %s202, 1
    %204 = vsyncpa [#allocation5], 1
    %s205 = scalar_lea.sflag [#allocation5], 1
    %206 = vsyncpa %s205, 1

</llo_original>
